<compile_context>
chip_gen: v7x
topology: tpu7x:2x2x1
jax: 0.10.0
libtpu: 0.0.40
codegen_flags: <defaults>
</compile_context>

<pallas_src>
import functools

import jax
import jax.numpy as jnp
from jax.experimental import pallas as pl
from jax.experimental.pallas import tpu as pltpu


# ----------------------------------------------------------------------------
# Helpers
# ----------------------------------------------------------------------------
def _round_up(x, m):
    return ((x + m - 1) // m) * m


def _sublane(dtype):
    # Minimum sublane tile: 8 for 4-byte, 16 for 2-byte, 32 for 1-byte dtypes.
    return {4: 8, 2: 16, 1: 32}.get(jnp.dtype(dtype).itemsize, 8)


def _vmem_budget_bytes():
    # Generation-aware scoped-VMEM budget: 0.75 x physical capacity
    # (~96 MiB on v5e/v6e, ~48 MiB on v7x). Falls back to the smallest
    # generation (v7x, 64 MiB) if the query is unavailable.
    cap = 64 * 1024 * 1024
    try:
        info = pltpu.get_tpu_info()
        cap = int(getattr(info, "vmem_capacity_bytes", 0)) or cap
    except Exception:
        pass
    return (3 * cap) // 4


def _largest_divisor_tile(dim, cap, granule):
    """Largest multiple of `granule` that divides `dim` and is <= cap.

    `dim` is assumed to already be a multiple of `granule`, so `granule`
    itself is always a valid fallback.
    """
    if dim <= cap:
        return dim
    t = (cap // granule) * granule
    while t > granule:
        if dim % t == 0:
            return t
        t -= granule
    return granule


def _tile_footprint_bytes(tm, tn, tk, in_itemsize, out_itemsize, use_acc):
    f = 2 * (tm * tk + tk * tn + tn) * in_itemsize   # double-buffered x, W, bias
    f += 2 * tm * tn * out_itemsize                  # double-buffered output
    if use_acc:
        f += tm * tn * 4                             # f32 accumulator scratch
    return f


# ----------------------------------------------------------------------------
# Kernels
# ----------------------------------------------------------------------------
def _dense_kernel_f32out(x_ref, w_ref, b_ref, o_ref):
    # f32 output: accumulate directly into the resident output tile (its block
    # index (i, j) is constant along k). Bias seeds the accumulator at k == 0,
    # so no scratch buffer and no final acc -> o copy is needed.
    @pl.when(pl.program_id(2) == 0)
    def _():
        o_ref[...] = jnp.broadcast_to(b_ref[...].astype(jnp.float32), o_ref.shape)

    o_ref[...] += jnp.dot(x_ref[...], w_ref[...],
                          preferred_element_type=jnp.float32)


def _dense_kernel_acc(x_ref, w_ref, b_ref, o_ref, acc_ref):
    # Narrow output dtype (e.g. bf16): keep an f32 VMEM accumulator, add bias
    # and downcast exactly once at the last k step.
    k = pl.program_id(2)

    @pl.when(k == 0)
    def _():
        acc_ref[...] = jnp.zeros_like(acc_ref)

    acc_ref[...] += jnp.dot(x_ref[...], w_ref[...],
                            preferred_element_type=jnp.float32)

    @pl.when(k == pl.num_programs(2) - 1)
    def _():
        o_ref[...] = (acc_ref[...] + b_ref[...].astype(jnp.float32)).astype(o_ref.dtype)


# ----------------------------------------------------------------------------
# Jitted apply (weight/bias already transposed + padded to 128 multiples)
# ----------------------------------------------------------------------------
@functools.partial(jax.jit, static_argnames=("out_size",))
def _dense_apply(x, w_t, b_row, out_size):
    """y = x @ W.T + b, with W pre-transposed/padded: w_t (k_pad, n_pad)."""
    B, in_size = x.shape
    k_pad, n_pad = w_t.shape
    in_dt = x.dtype
    out_dt = x.dtype
    in_item = jnp.dtype(in_dt).itemsize
    out_item = jnp.dtype(out_dt).itemsize
    sub = _sublane(in_dt)
    use_acc = jnp.dtype(out_dt) != jnp.dtype("float32")

    budget = _vmem_budget_bytes()

    # -- Tile selection (dtype-aware caps; tn/tk are divisors of the 128-padded
    #    dims so padding never grows beyond 128 granularity).
    tm_cap = 512
    tn_cap = max(128, 2048 // in_item)   # f32 -> 512, bf16 -> 1024, int8 -> 2048
    tk_cap = max(128, 4096 // in_item)   # f32 -> 1024, bf16 -> 2048, int8 -> 4096

    tm = min(tm_cap, _round_up(B, sub))
    tn = _largest_divisor_tile(n_pad, tn_cap, 128)
    tk = _largest_divisor_tile(k_pad, tk_cap, 128)

    # Shrink (rarely needed with these caps) until 1.5x footprint fits budget.
    while int(1.5 * _tile_footprint_bytes(tm, tn, tk, in_item, out_item, use_acc)) > budget:
        if tk > 128 and tk % 256 == 0:
            tk //= 2
        elif tn > 128 and tn % 256 == 0:
            tn //= 2
        elif tm > sub and tm % (2 * sub) == 0:
            tm //= 2
        else:
            break

    m_pad = _round_up(B, tm)

    # v7x: make sure both TensorCores get at least one parallel output tile.
    while (m_pad // tm) * (n_pad // tn) < 2:
        if tn >= 256 and tn % 256 == 0:
            tn //= 2
        elif tm >= 2 * sub and tm % (2 * sub) == 0:
            tm //= 2
            m_pad = _round_up(B, tm)
        else:
            break

    grid = (m_pad // tm, n_pad // tn, k_pad // tk)
    gm, gn, _ = grid

    # Per-call activation pad only (weights were padded once at load time).
    xp = x
    if m_pad != B or k_pad != in_size:
        xp = jnp.pad(x, ((0, m_pad - B), (0, k_pad - in_size)))

    footprint = _tile_footprint_bytes(tm, tn, tk, in_item, out_item, use_acc)
    vmem_limit = int(min(budget, max(int(1.5 * footprint), 16 * 1024 * 1024)))

    flops = 2 * m_pad * k_pad * n_pad
    # Grid-aware HBM traffic: x is re-read per N tile, W/b per M tile.
    bytes_accessed = (m_pad * k_pad * in_item * gn
                      + k_pad * n_pad * jnp.dtype(w_t.dtype).itemsize * gm
                      + n_pad * jnp.dtype(b_row.dtype).itemsize * gm
                      + m_pad * n_pad * out_item)

    kernel = _dense_kernel_acc if use_acc else _dense_kernel_f32out
    scratch = [pltpu.VMEM((tm, tn), jnp.float32)] if use_acc else []

    out_padded = pl.pallas_call(
        kernel,
        out_shape=jax.ShapeDtypeStruct((m_pad, n_pad), out_dt),
        grid_spec=pltpu.PrefetchScalarGridSpec(
            num_scalar_prefetch=0,
            grid=grid,
            in_specs=[
                pl.BlockSpec((tm, tk), lambda i, j, k: (i, k)),   # x tile
                pl.BlockSpec((tk, tn), lambda i, j, k: (k, j)),   # W.T tile (in, out)
                pl.BlockSpec((1, tn), lambda i, j, k: (0, j)),    # bias tile
            ],
            out_specs=pl.BlockSpec((tm, tn), lambda i, j, k: (i, j)),
            scratch_shapes=scratch,
        ),
        compiler_params=pltpu.CompilerParams(
            dimension_semantics=("parallel", "parallel", "arbitrary"),
            vmem_limit_bytes=vmem_limit,
        ),
        cost_estimate=pl.CostEstimate(
            flops=flops, transcendentals=0, bytes_accessed=bytes_accessed),
    )(xp, w_t, b_row)

    if m_pad == B and n_pad == out_size:
        return out_padded
    return out_padded[:B, :out_size]


# ----------------------------------------------------------------------------
# Module-equivalent wrapper: params are transposed + padded ONCE at load time.
# ----------------------------------------------------------------------------
class PallasDense:
    """Pallas equivalent of the PyTorch `Dense` module (a single nn.Linear)."""

    def __init__(self, weight, bias):
        # weight: (outSize, inSize) in PyTorch layout; bias: (outSize,)
        weight = jnp.asarray(weight)
        bias = jnp.asarray(bias)
        out_size, in_size = weight.shape
        k_pad = _round_up(in_size, 128)
        n_pad = _round_up(out_size, 128)

        # One-time layout work (not in the per-call path): transpose to
        # (in, out) so the kernel contraction is a plain MXU matmul, and
        # zero-pad K/N to 128 multiples (neutral for the contraction).
        w_t = jnp.transpose(weight)
        if (k_pad, n_pad) != (in_size, out_size):
            w_t = jnp.pad(w_t, ((0, k_pad - in_size), (0, n_pad - out_size)))
        b = bias if n_pad == out_size else jnp.pad(bias, (0, n_pad - out_size))

        self.w_t = jax.device_put(w_t)
        self.b_row = jax.device_put(b.reshape(1, n_pad))
        self.in_size = in_size
        self.out_size = out_size

    def __call__(self, x):
        return _dense_apply(x, self.w_t, self.b_row, self.out_size)


def dense_forward(x, weight, bias):
    """Functional one-off interface: y = x @ weight.T + bias."""
    return PallasDense(weight, bias)(x)


# ----------------------------------------------------------------------------
# Self-test
# ----------------------------------------------------------------------------
if __name__ == "__main__":
    key = jax.random.PRNGKey(0)

    def make_case(key, batch, in_size, out_size):
        k_x, k_w, k_b = jax.random.split(key, 3)
        x = jax.random.normal(k_x, (batch, in_size), dtype=jnp.float32)
        bound = 1.0 / (in_size ** 0.5)   # nn.Linear default init range
        weight = jax.random.uniform(
            k_w, (out_size, in_size), minval=-bound, maxval=bound,
            dtype=jnp.float32)
        bias = jax.random.uniform(
            k_b, (out_size,), minval=-bound, maxval=bound, dtype=jnp.float32)
        return x, weight, bias

    k1, k2 = jax.random.split(key)

    # Case 1: small shapes matching the module's typical use (8 x 32 -> 64).
    x, w, b = make_case(k1, batch=8, in_size=32, out_size=64)
    layer = PallasDense(w, b)
    out = jax.block_until_ready(layer(x))
    ref = x @ w.T + b
    assert out.shape == ref.shape
    assert jnp.allclose(out, ref, atol=1e-5, rtol=1e-5)

    # Case 2: multi-tile shape with non-128-aligned K/N (exercises 128-granular
    # padding, the (M, N, K) grid and the >=2-parallel-tiles split).
    x2, w2, b2 = make_case(k2, batch=256, in_size=300, out_size=520)
    layer2 = PallasDense(w2, b2)
    out2 = jax.block_until_ready(layer2(x2))
    ref2 = x2 @ w2.T + b2
    assert out2.shape == ref2.shape
    assert jnp.allclose(out2, ref2, atol=1e-4, rtol=1e-4)

    print("KERNEL_OK")
</pallas_src>

<mosaic_0001>
module attributes {stable_mosaic.version = 11 : i64} {
  func.func @_dense_kernel_f32out(%arg0: i32, %arg1: i32, %arg2: i32, %arg3: memref<8x128xf32, #tpu.memory_space<vmem>>, %arg4: memref<128x128xf32, #tpu.memory_space<vmem>>, %arg5: memref<1x128xf32, #tpu.memory_space<vmem>>, %arg6: memref<8x128xf32, #tpu.memory_space<vmem>>) attributes {dimension_semantics = [#tpu.dimension_semantics<parallel>, #tpu.dimension_semantics<parallel>, #tpu.dimension_semantics<arbitrary>], iteration_bounds = array<i64: 1, 1, 1>, scalar_prefetch = 0 : i64, scratch_operands = 0 : i64, tpu.core_type = #tpu.core_type<tc>, window_params = [{transform_indices = @transform_0, window_bounds = array<i64: 8, 128>}, {transform_indices = @transform_1, window_bounds = array<i64: 128, 128>}, {transform_indices = @transform_2, window_bounds = array<i64: 1, 128>}, {transform_indices = @transform_3, window_bounds = array<i64: 8, 128>}]} {
    %c0_i32 = arith.constant 0 : i32
    %0 = arith.cmpi eq, %arg2, %c0_i32 : i32
    %1 = arith.extui %0 : i1 to i32
    %c0_i32_0 = arith.constant 0 : i32
    %2 = arith.cmpi ne, %1, %c0_i32_0 : i32
    scf.if %2 {
      %c0_8 = arith.constant 0 : index
      %c0_9 = arith.constant 0 : index
      %9 = vector.load %arg5[%c0_8, %c0_9] : memref<1x128xf32, #tpu.memory_space<vmem>>, vector<1x128xf32>
      %10 = vector.shape_cast %9 : vector<1x128xf32> to vector<1x128xf32>
      %11 = vector.broadcast %10 : vector<1x128xf32> to vector<8x128xf32>
      %c0_10 = arith.constant 0 : index
      %c0_11 = arith.constant 0 : index
      %12 = vector.load %arg6[%c0_10, %c0_11] : memref<8x128xf32, #tpu.memory_space<vmem>>, vector<8x128xf32>
      tpu.vector_store %arg6[%c0_10, %c0_11], %11 {strides = array<i32>} : memref<8x128xf32, #tpu.memory_space<vmem>>, vector<8x128xf32>,
    } else {
    }
    %c0 = arith.constant 0 : index
    %c0_1 = arith.constant 0 : index
    %3 = vector.load %arg6[%c0, %c0_1] : memref<8x128xf32, #tpu.memory_space<vmem>>, vector<8x128xf32>
    %c0_2 = arith.constant 0 : index
    %c0_3 = arith.constant 0 : index
    %4 = vector.load %arg3[%c0_2, %c0_3] : memref<8x128xf32, #tpu.memory_space<vmem>>, vector<8x128xf32>
    %c0_4 = arith.constant 0 : index
    %c0_5 = arith.constant 0 : index
    %5 = vector.load %arg4[%c0_4, %c0_5] : memref<128x128xf32, #tpu.memory_space<vmem>>, vector<128x128xf32>
    %cst = arith.constant dense<0.000000e+00> : vector<8x128xf32>
    %6 = tpu.matmul %4, %5, %cst {dimension_numbers = #tpu.dot_dimension_numbers<[1], [0], [0], [1], [0, 0, 1, 1], [], []>} : vector<8x128xf32>, vector<128x128xf32>, vector<8x128xf32> -> vector<8x128xf32>
    %7 = arith.addf %3, %6 : vector<8x128xf32>
    %c0_6 = arith.constant 0 : index
    %c0_7 = arith.constant 0 : index
    %8 = vector.load %arg6[%c0_6, %c0_7] : memref<8x128xf32, #tpu.memory_space<vmem>>, vector<8x128xf32>
    tpu.vector_store %arg6[%c0_6, %c0_7], %7 {strides = array<i32>} : memref<8x128xf32, #tpu.memory_space<vmem>>, vector<8x128xf32>,
    return
  }
  func.func @transform_0(%arg0: i32, %arg1: i32, %arg2: i32) -> (i32, i32) {
    %c0_i32 = arith.constant 0 : i32
    return %arg0, %arg2 : i32, i32
  }
  func.func @transform_1(%arg0: i32, %arg1: i32, %arg2: i32) -> (i32, i32) {
    %c0_i32 = arith.constant 0 : i32
    return %arg2, %arg1 : i32, i32
  }
  func.func @transform_2(%arg0: i32, %arg1: i32, %arg2: i32) -> (i32, i32) {
    %c0_i32 = arith.constant 0 : i32
    %c0_i32_0 = arith.constant 0 : i32
    return %c0_i32, %arg1 : i32, i32
  }
  func.func @transform_3(%arg0: i32, %arg1: i32, %arg2: i32) -> (i32, i32) {
    %c0_i32 = arith.constant 0 : i32
    return %arg0, %arg1 : i32, i32
  }
}

</mosaic_0001>

<llo_original>
// kernel: _dense_apply.1
$region0: #{_dense_apply.1}
  #allocation0 [shape = 'u32[]', space=smem, size = 0x4, offset = 0x4, fixed_abs, tag = 'smem constant byte address 0x4 - core index']
  #allocation1 [shape = 'u32[144,128]{1,0:T(1,128)}', space=vmem, size = 0x12000, scoped, tag = 'internal scratch']
  %s0 = inlined_call_operand.vmem [shape: f32[8,128], index: 0, kind: input, shape index: {}]
  %s1 = inlined_call_operand.hbm [shape: f32[128,128], index: 1, kind: input, shape index: {}]
  %s2 = inlined_call_operand.vmem [shape: f32[1,128], index: 2, kind: input, shape index: {}]
  %s3 = inlined_call_operand.hbm [shape: f32[8,128], index: 3, kind: output, shape index: {}]
  %s4 = sld [smem:[#allocation0]]
  $region30: #{_dense_apply.1} parent=0
    _
  %s6 = ssub.s32 1, %s4
  %s7 = scalar_select 0, %s6, %s4
  $region1: #{_dense_apply.1} parent=0
    #allocation2 [shape = 'u8[65536]{0}', space=vmem, size = 0x10000, scoped, tag = 'input window, operand 1, single buffered']
    #allocation3 [shape = 's32[1]{0}', space=sflag, size = 0x4, scoped, tag = 'scoped memory for _dense_apply.1']
    #allocation4 [shape = 's32[1]{0}', space=sflag, size = 0x4, scoped, tag = 'scoped memory for _dense_apply.1']
    #allocation5 [shape = 'u8[4096]{0}', space=vmem, size = 0x1000, scoped, tag = 'output window, operand 0, single buffered']
    %8 = vsyncpa [#allocation3], 0
    %9 = vsyncpa [#allocation4], 0
    // Predicated region
    $region2: #{_dense_apply.1} parent=1 // pred_check
      _
    $region3: #{_dense_apply.1} parent=1 // pred_check_branch
      %11 = sbr.rel (0) target = $region5
    $region4: #{_dense_apply.1} parent=1 // pred_region
      _
    $region5: #{_dense_apply.1} parent=1 // pred_fallthru
      _
    // Predicated region
    $region6: #{_dense_apply.1} parent=1 // pred_check
      _
    $region7: #{_dense_apply.1} parent=1 // pred_check_branch
      %13 = sbr.rel (0) target = $region9
    $region8: #{_dense_apply.1} parent=1 // pred_region
      %s15 = ssub.s32 2048, 2048
      %16 = vsyncadd [#allocation3], %s15
      %s17 = sshll.u32 [#allocation2], 4
      %s18 = int_to_ptr.vmem [resolvable:$true] %s17
      %23 = dma.hbm_to_vmem [thread:$0]  %s1, 2048, %s18, [#allocation3], 128, 128, 8
    $region9: #{_dense_apply.1} parent=1 // pred_fallthru
      _
    // Predicated region
    $region10: #{_dense_apply.1} parent=1 // pred_check
      _
    $region11: #{_dense_apply.1} parent=1 // pred_check_branch
      %25 = sbr.rel (0) target = $region13
    $region12: #{_dense_apply.1} parent=1 // pred_region
      _
    $region13: #{_dense_apply.1} parent=1 // pred_fallthru
      _
    // Predicated region
    $region14: #{_dense_apply.1} parent=1 // pred_check
      _
    $region15: #{_dense_apply.1} parent=1 // pred_check_branch
      %27 = sbr.rel (0) target = $region17
    $region16: #{_dense_apply.1} parent=1 // pred_region
      %28 = dma.done [#allocation3], 2048
    $region17: #{_dense_apply.1} parent=1 // pred_fallthru
      _
    %p29 = scmp.eq.s32.totalorder 0, 0
    // Predicated region
    $region18: #{_dense_apply.1} parent=1 // pred_check
      %p30 = pneg %p29
    $region19: #{_dense_apply.1} parent=1 // pred_check_branch
      %32 = sbr.rel (%p30) target = $region21
    $region20: #{_dense_apply.1} parent=1 // pred_region
      %v33 = vld [vmem:[%s2] sm:$0x1]
      %v35 = vlaneseq
      %v36 = vshrl.u32 %v35, 7
      %v37 = vsub.s32 0, %v36
      %v38 = vrot.slane %v33, %v37
      %40 = vst [vmem:[#allocation5] sm:$0xff] %v38
    $region21: #{_dense_apply.1} parent=1 // pred_fallthru
      _
    %v41 = vld [vmem:[#allocation5] sm:$0xff]
    %v42 = vld [vmem:[%s0] sm:$0xff]
    %v43 = vld [vmem:[#allocation2] sm:$0xff]
    %v44 = vld [vmem:[#allocation2 + $0x8] sm:$0xff]
    %v45 = vld [vmem:[#allocation2 + $0x10] sm:$0xff]
    %v46 = vld [vmem:[#allocation2 + $0x18] sm:$0xff]
    %v47 = vld [vmem:[#allocation2 + $0x20] sm:$0xff]
    %v48 = vld [vmem:[#allocation2 + $0x28] sm:$0xff]
    %v49 = vld [vmem:[#allocation2 + $0x30] sm:$0xff]
    %v50 = vld [vmem:[#allocation2 + $0x38] sm:$0xff]
    %v51 = vld [vmem:[#allocation2 + $0x40] sm:$0xff]
    %v52 = vld [vmem:[#allocation2 + $0x48] sm:$0xff]
    %v53 = vld [vmem:[#allocation2 + $0x50] sm:$0xff]
    %v54 = vld [vmem:[#allocation2 + $0x58] sm:$0xff]
    %v55 = vld [vmem:[#allocation2 + $0x60] sm:$0xff]
    %v56 = vld [vmem:[#allocation2 + $0x68] sm:$0xff]
    %v57 = vld [vmem:[#allocation2 + $0x70] sm:$0xff]
    %v58 = vld [vmem:[#allocation2 + $0x78] sm:$0xff]
    %59 = vmatprep.subr.mxu0 0.0
    %60 = vmatpush1.msra.mxu0 %v43
    %61 = vmatprep.subr.mxu0 0.0
    %62 = vmatpush1.msra.mxu0 %v44
    %63 = vmatprep.subr.mxu0 0.0
    %64 = vmatpush1.msra.mxu0 %v45
    %65 = vmatprep.subr.mxu0 0.0
    %66 = vmatpush1.msra.mxu0 %v46
    %67 = vmatprep.subr.mxu0 0.0
    %68 = vmatpush1.msra.mxu0 %v47
    %69 = vmatprep.subr.mxu0 0.0
    %70 = vmatpush1.msra.mxu0 %v48
    %71 = vmatprep.subr.mxu0 0.0
    %72 = vmatpush1.msra.mxu0 %v49
    %73 = vmatprep.subr.mxu0 0.0
    %74 = vmatpush1.msra.mxu0 %v50
    %75 = vmatprep.subr.mxu0 0.0
    %76 = vmatpush1.msra.mxu0 %v51
    %77 = vmatprep.subr.mxu0 0.0
    %78 = vmatpush1.msra.mxu0 %v52
    %79 = vmatprep.subr.mxu0 0.0
    %80 = vmatpush1.msra.mxu0 %v53
    %81 = vmatprep.subr.mxu0 0.0
    %82 = vmatpush1.msra.mxu0 %v54
    %83 = vmatprep.subr.mxu0 0.0
    %84 = vmatpush1.msra.mxu0 %v55
    %85 = vmatprep.subr.mxu0 0.0
    %86 = vmatpush1.msra.mxu0 %v56
    %87 = vmatprep.subr.mxu0 0.0
    %88 = vmatpush1.msra.mxu0 %v57
    %89 = vmatprep.subr.mxu0 0.0
    %90 = vmatpush1.msra.mxu0 %v58
    %91 = vmatprep.subr.mxu0 0.0
    %92 = vmatpush1.msra.mxu0 0.0
    %93 = vmatprep.subr.mxu0 0.0
    %94 = vmatpush1.msra.mxu0 0.0
    %95 = vmatprep.subr.mxu0 0.0
    %96 = vmatpush1.msra.mxu0 0.0
    %97 = vmatprep.subr.mxu0 0.0
    %98 = vmatpush1.msra.mxu0 0.0
    %99 = vmatprep.subr.mxu0 0.0
    %100 = vmatpush1.msra.mxu0 0.0
    %101 = vmatprep.subr.mxu0 0.0
    %102 = vmatpush1.msra.mxu0 0.0
    %103 = vmatprep.subr.mxu0 0.0
    %104 = vmatpush1.msra.mxu0 0.0
    %105 = vmatprep.subr.mxu0 0.0
    %106 = vmatpush1.msra.mxu0 0.0
    %107 = vmatprep.subr.mxu0 0.0
    %108 = vmatpush1.msra.mxu0 0.0
    %109 = vmatprep.subr.mxu0 0.0
    %110 = vmatpush1.msra.mxu0 0.0
    %111 = vmatprep.subr.mxu0 0.0
    %112 = vmatpush1.msra.mxu0 0.0
    %113 = vmatprep.subr.mxu0 0.0
    %114 = vmatpush1.msra.mxu0 0.0
    %115 = vmatprep.subr.mxu0 0.0
    %116 = vmatpush1.msra.mxu0 0.0
    %117 = vmatprep.subr.mxu0 0.0
    %118 = vmatpush1.msra.mxu0 0.0
    %119 = vmatprep.subr.mxu0 0.0
    %120 = vmatpush1.msra.mxu0 0.0
    %121 = vmatprep.subr.mxu0 0.0
    %122 = vmatpush1.msra.mxu0 0.0
    %123 = vmatprep.mubr.f32.mxu0 0.0
    %124 = vmatmul.mubr.f32.gmra.mrb[0].mxu0 %v42
    %v125 = vpop.f32.mrb[0].mxu0
    %v126 = vadd.f32 0.0, %v125
    %v127 = vpop.f32.mrb[0].mxu0
    %128 = vdwg.mxu0
    %v129 = vadd.f32 %v41, %v126
    %130 = vst [vmem:[#allocation5] sm:$0xff] %v129
    // Predicated region
    $region22: #{_dense_apply.1} parent=1 // pred_check
      _
    $region23: #{_dense_apply.1} parent=1 // pred_check_branch
      %132 = sbr.rel (0) target = $region25
    $region24: #{_dense_apply.1} parent=1 // pred_region
      %s134 = ssub.s32 128, 128
      %135 = vsyncadd [#allocation4], %s134
      %s137 = sshll.u32 [#allocation5], 4
      %s138 = int_to_ptr.vmem [resolvable:$true] %s137
      %140 = dma.vmem_to_hbm [thread:$0]  %s138, 128, %s3, [#allocation4]
    $region25: #{_dense_apply.1} parent=1 // pred_fallthru
      _
    // Predicated region
    $region26: #{_dense_apply.1} parent=1 // pred_check
      _
    $region27: #{_dense_apply.1} parent=1 // pred_check_branch
      %142 = sbr.rel (0) target = $region29
    $region28: #{_dense_apply.1} parent=1 // pred_region
      %143 = dma.done [#allocation4], 128
    $region29: #{_dense_apply.1} parent=1 // pred_fallthru
      _
    %144 = vsyncpa [#allocation3], 1
    %145 = vsyncpa [#allocation4], 1

</llo_original>
